<compile_context>
chip_gen: v6e
topology: v6e:2x2x1
jax: 0.10.0
libtpu: 0.0.40
codegen_flags: <defaults>
</compile_context>

<pallas_src>
import functools

import jax
import jax.numpy as jnp
from jax import lax
from jax.experimental import pallas as pl
from jax.experimental.pallas import tpu as pltpu

EPS = 1e-5
LANE = 128
SUBLANE = 8


def _round_up(n, m):
    return ((n + m - 1) // m) * m


def _mlp_bn_kernel(x_ref, w1_ref, pvec_ref, w2_ref, o_ref):
    # x_ref   : (tn, B, xdim) f32   -- tn problem instances, each a (B, xdim) batch
    # w1_ref  : (xdim, H)     bf16
    # pvec_ref: (8, VPAD)     f32   -- rows 0..2 = gamma, beta, b2 (lane-padded)
    # w2_ref  : (H, YPAD)     bf16  -- lane-padded second weight
    # o_ref   : (tn, B, YPAD) f32   -- lane-dense output slab
    tn, b, xdim = x_ref.shape
    H = w1_ref.shape[1]
    ypad = o_ref.shape[2]

    w1 = w1_ref[...]
    w2 = w2_ref[...]
    pv = pvec_ref[...]                                   # (8, VPAD)
    gamma = pv[0:1, :H]                                  # (1, H)
    beta = pv[1:2, :H]                                   # (1, H)
    b2 = pv[2:3, :ypad]                                  # (1, YPAD)

    # Linear 1 over ALL tn*B rows at once: bf16 operands on the MXU, f32 acc.
    # (Linear1 bias omitted: BatchNorm's mean-subtraction cancels it exactly.)
    x2 = x_ref[...].reshape(tn * b, xdim)
    h = jnp.dot(x2.astype(jnp.bfloat16), w1,
                preferred_element_type=jnp.float32)      # (tn*B, H) f32

    # One-pass per-instance BatchNorm statistics (biased variance) with the
    # affine transform folded into a single scale/shift.
    h3 = h.reshape(tn, b, H)
    inv_b = jnp.float32(1.0 / b)
    s1 = jnp.sum(h3, axis=1, keepdims=True)              # (tn, 1, H)
    s2 = jnp.sum(h3 * h3, axis=1, keepdims=True)         # (tn, 1, H)
    mean = s1 * inv_b
    var = jnp.maximum(s2 * inv_b - mean * mean, 0.0)     # biased variance
    scale = gamma[None, :, :] * lax.rsqrt(var + EPS)     # (tn, 1, H)
    shift = beta[None, :, :] - mean * scale              # (tn, 1, H)
    a = jnp.maximum(h3 * scale + shift, 0.0)             # BN + ReLU, f32

    # Linear 2 into the lane-padded output slab (padded cols stay zero).
    y = jnp.dot(a.reshape(tn * b, H).astype(jnp.bfloat16), w2,
                preferred_element_type=jnp.float32) + b2  # (tn*B, YPAD)
    o_ref[...] = y.reshape(tn, b, ypad).astype(o_ref.dtype)


@functools.partial(jax.jit, static_argnames=("tile_n",))
def nnsolver_two_forward(x, w1, b1, gamma, beta, w2, b2, tile_n=16):
    """x: (N, B, xdim) -- N independent instances, each a (B, xdim) batch.
    Returns (N, B, ydim); BN statistics are computed per instance over B rows.
    `b1` is accepted for interface parity but cancels inside BatchNorm."""
    del b1  # Linear1 bias is exactly cancelled by BatchNorm's mean subtraction.
    N, B, xdim = x.shape
    H = w1.shape[1]
    ydim = w2.shape[1]
    ypad = _round_up(ydim, LANE)
    vpad = max(_round_up(H, LANE), ypad)

    # Instances per grid step.  Flattening (tn*B) rows onto the MXU needs B to
    # be sublane-aligned; otherwise fall back to one instance per step.
    tn = min(tile_n, N) if (B % SUBLANE == 0) else 1
    n_pad = _round_up(N, tn)
    if n_pad != N:
        x = jnp.pad(x, ((0, n_pad - N), (0, 0), (0, 0)))

    # Pack the small per-feature vectors into one lane-padded slab (1 DMA).
    pvec = jnp.zeros((8, vpad), jnp.float32)
    pvec = pvec.at[0, :H].set(gamma.reshape(-1))
    pvec = pvec.at[1, :H].set(beta.reshape(-1))
    pvec = pvec.at[2, :ydim].set(b2.reshape(-1))

    # bf16 MXU operands; lane-pad W2 so the output store is lane-dense.
    w1_bf = w1.astype(jnp.bfloat16)
    w2_bf = jnp.zeros((H, ypad), jnp.bfloat16).at[:, :ydim].set(
        w2.astype(jnp.bfloat16))

    out = pl.pallas_call(
        _mlp_bn_kernel,
        out_shape=jax.ShapeDtypeStruct((n_pad, B, ypad), jnp.float32),
        grid=(n_pad // tn,),
        in_specs=[
            pl.BlockSpec((tn, B, xdim), lambda n: (n, 0, 0)),  # per-tile x
            pl.BlockSpec((xdim, H), lambda n: (0, 0)),         # shared W1
            pl.BlockSpec((8, vpad), lambda n: (0, 0)),         # packed vectors
            pl.BlockSpec((H, ypad), lambda n: (0, 0)),         # shared W2
        ],
        out_specs=pl.BlockSpec((tn, B, ypad), lambda n: (n, 0, 0)),
        compiler_params=pltpu.CompilerParams(
            dimension_semantics=("parallel",)),
    )(x, w1_bf, pvec, w2_bf)
    return out[:N, :, :ydim]


def _init_params(key, xdim, hidden, ydim):
    """Deterministic parameter init matching the module's __init__ recipe."""
    k1, k2, k3, k4 = jax.random.split(key, 4)
    # kaiming_normal_ (fan_in, gain=sqrt(2)); weights stored transposed (in, out).
    w1 = jax.random.normal(k1, (xdim, hidden), jnp.float32) * jnp.sqrt(2.0 / xdim)
    w2 = jax.random.normal(k2, (hidden, ydim), jnp.float32) * jnp.sqrt(2.0 / hidden)
    # PyTorch Linear default bias init: U(-1/sqrt(fan_in), 1/sqrt(fan_in))
    b1 = jax.random.uniform(k3, (hidden,), jnp.float32,
                            -1.0 / jnp.sqrt(xdim), 1.0 / jnp.sqrt(xdim))
    b2 = jax.random.uniform(k4, (ydim,), jnp.float32,
                            -1.0 / jnp.sqrt(hidden), 1.0 / jnp.sqrt(hidden))
    # BatchNorm1d affine params (default gamma=1, beta=0)
    gamma = jnp.ones((hidden,), jnp.float32)
    beta = jnp.zeros((hidden,), jnp.float32)
    return w1, b1, gamma, beta, w2, b2


def _reference(x, w1, b1, gamma, beta, w2, b2):
    """Pure-JAX reference (same bf16-operand / f32-accumulate matmul recipe,
    Linear1 bias kept -- BatchNorm makes it a no-op up to f32 rounding)."""
    h = jnp.einsum('nbi,ih->nbh', x.astype(jnp.bfloat16), w1.astype(jnp.bfloat16),
                   preferred_element_type=jnp.float32) + b1
    mean = jnp.mean(h, axis=1, keepdims=True)
    var = jnp.mean((h - mean) ** 2, axis=1, keepdims=True)
    hbn = (h - mean) * lax.rsqrt(var + EPS) * gamma + beta
    a = jnp.maximum(hbn, 0.0)
    y = jnp.einsum('nbh,ho->nbo', a.astype(jnp.bfloat16), w2.astype(jnp.bfloat16),
                   preferred_element_type=jnp.float32) + b2
    return y


# TODO(synk): 'acopf' probType branch (sigmoid + pmin/pmax/qmin/qmax/vmin/vmax
# rescaling + concat with slack outputs) and BatchNorm running-stat updates are
# not reproduced; only the 'simple'/'nonconvex' forward path is implemented.

if __name__ == "__main__":
    N_INST, B, XDIM, HIDDEN, YDIM = 4, 8, 16, 32, 8

    key = jax.random.PRNGKey(0)
    kx, kp = jax.random.split(key)
    x = jax.random.normal(kx, (N_INST, B, XDIM), jnp.float32)
    params = _init_params(kp, XDIM, HIDDEN, YDIM)

    out = nnsolver_two_forward(x, *params)
    out = jax.block_until_ready(out)

    ref = _reference(x, *params)
    assert out.shape == (N_INST, B, YDIM)
    assert jnp.allclose(out, ref, atol=1e-2, rtol=1e-2), "mismatch vs JAX reference"

    print("KERNEL_OK")
</pallas_src>

<mosaic_0001>
module attributes {stable_mosaic.version = 11 : i64} {
  func.func @_mlp_bn_kernel(%arg0: i32, %arg1: memref<4x8x16xf32, #tpu.memory_space<vmem>>, %arg2: memref<16x32xbf16, #tpu.memory_space<vmem>>, %arg3: memref<8x128xf32, #tpu.memory_space<vmem>>, %arg4: memref<32x128xbf16, #tpu.memory_space<vmem>>, %arg5: memref<4x8x128xf32, #tpu.memory_space<vmem>>) attributes {dimension_semantics = [#tpu.dimension_semantics<parallel>], iteration_bounds = array<i64: 1>, scalar_prefetch = 0 : i64, scratch_operands = 0 : i64, tpu.core_type = #tpu.core_type<tc>, window_params = [{transform_indices = @transform_0, window_bounds = array<i64: 4, 8, 16>}, {pipeline_mode = #tpu.pipeline_mode<synchronous>, transform_indices = @transform_1, window_bounds = array<i64: 16, 32>}, {pipeline_mode = #tpu.pipeline_mode<synchronous>, transform_indices = @transform_2, window_bounds = array<i64: 8, 128>}, {pipeline_mode = #tpu.pipeline_mode<synchronous>, transform_indices = @transform_3, window_bounds = array<i64: 32, 128>}, {transform_indices = @transform_4, window_bounds = array<i64: 4, 8, 128>}]} {
    %c0 = arith.constant 0 : index
    %c0_0 = arith.constant 0 : index
    %0 = vector.load %arg2[%c0, %c0_0] : memref<16x32xbf16, #tpu.memory_space<vmem>>, vector<16x32xbf16>
    %c0_1 = arith.constant 0 : index
    %c0_2 = arith.constant 0 : index
    %1 = vector.load %arg4[%c0_1, %c0_2] : memref<32x128xbf16, #tpu.memory_space<vmem>>, vector<32x128xbf16>
    %c0_3 = arith.constant 0 : index
    %c0_4 = arith.constant 0 : index
    %2 = vector.load %arg3[%c0_3, %c0_4] : memref<8x128xf32, #tpu.memory_space<vmem>>, vector<8x128xf32>
    %3 = vector.extract_strided_slice %2 {offsets = [0, 0], sizes = [1, 32], strides = [1, 1]} : vector<8x128xf32> to vector<1x32xf32>
    %4 = vector.extract_strided_slice %2 {offsets = [1, 0], sizes = [1, 32], strides = [1, 1]} : vector<8x128xf32> to vector<1x32xf32>
    %5 = vector.extract_strided_slice %2 {offsets = [2, 0], sizes = [1, 128], strides = [1, 1]} : vector<8x128xf32> to vector<1x128xf32>
    %c0_5 = arith.constant 0 : index
    %c0_6 = arith.constant 0 : index
    %c0_7 = arith.constant 0 : index
    %6 = vector.load %arg1[%c0_5, %c0_6, %c0_7] : memref<4x8x16xf32, #tpu.memory_space<vmem>>, vector<4x8x16xf32>
    %7 = vector.shape_cast %6 : vector<4x8x16xf32> to vector<32x16xf32>
    %8 = arith.truncf %7 : vector<32x16xf32> to vector<32x16xbf16>
    %cst = arith.constant dense<0.000000e+00> : vector<32x32xf32>
    %9 = tpu.matmul %8, %0, %cst {dimension_numbers = #tpu.dot_dimension_numbers<[1], [0], [0], [1], [0, 0, 1, 1], [], []>} : vector<32x16xbf16>, vector<16x32xbf16>, vector<32x32xf32> -> vector<32x32xf32>
    %10 = vector.shape_cast %9 : vector<32x32xf32> to vector<4x8x32xf32>
    %cst_8 = arith.constant dense<0.000000e+00> : vector<4x32xf32>
    %11 = vector.multi_reduction <add>, %10, %cst_8 [1] : vector<4x8x32xf32> to vector<4x32xf32>
    %12 = vector.shape_cast %11 : vector<4x32xf32> to vector<4x1x32xf32>
    %13 = arith.mulf %10, %10 : vector<4x8x32xf32>
    %cst_9 = arith.constant dense<0.000000e+00> : vector<4x32xf32>
    %14 = vector.multi_reduction <add>, %13, %cst_9 [1] : vector<4x8x32xf32> to vector<4x32xf32>
    %15 = vector.shape_cast %14 : vector<4x32xf32> to vector<4x1x32xf32>
    %cst_10 = arith.constant 1.250000e-01 : f32
    %16 = vector.broadcast %cst_10 : f32 to vector<4x1x32xf32>
    %17 = arith.mulf %12, %16 : vector<4x1x32xf32>
    %cst_11 = arith.constant 1.250000e-01 : f32
    %18 = vector.broadcast %cst_11 : f32 to vector<4x1x32xf32>
    %19 = arith.mulf %15, %18 : vector<4x1x32xf32>
    %20 = arith.mulf %17, %17 : vector<4x1x32xf32>
    %21 = arith.subf %19, %20 : vector<4x1x32xf32>
    %cst_12 = arith.constant 0.000000e+00 : f32
    %22 = vector.broadcast %cst_12 : f32 to vector<4x1x32xf32>
    %23 = arith.maximumf %21, %22 : vector<4x1x32xf32>
    %24 = vector.shape_cast %3 : vector<1x32xf32> to vector<1x1x32xf32>
    %cst_13 = arith.constant 9.99999974E-6 : f32
    %25 = vector.broadcast %cst_13 : f32 to vector<4x1x32xf32>
    %26 = arith.addf %23, %25 : vector<4x1x32xf32>
    %27 = math.rsqrt %26 : vector<4x1x32xf32>
    %28 = vector.broadcast %24 : vector<1x1x32xf32> to vector<4x1x32xf32>
    %29 = arith.mulf %28, %27 : vector<4x1x32xf32>
    %30 = vector.shape_cast %4 : vector<1x32xf32> to vector<1x1x32xf32>
    %31 = arith.mulf %17, %29 : vector<4x1x32xf32>
    %32 = vector.broadcast %30 : vector<1x1x32xf32> to vector<4x1x32xf32>
    %33 = arith.subf %32, %31 : vector<4x1x32xf32>
    %34 = vector.broadcast %29 : vector<4x1x32xf32> to vector<4x8x32xf32>
    %35 = arith.mulf %10, %34 : vector<4x8x32xf32>
    %36 = vector.broadcast %33 : vector<4x1x32xf32> to vector<4x8x32xf32>
    %37 = arith.addf %35, %36 : vector<4x8x32xf32>
    %cst_14 = arith.constant 0.000000e+00 : f32
    %38 = vector.broadcast %cst_14 : f32 to vector<4x8x32xf32>
    %39 = arith.maximumf %37, %38 : vector<4x8x32xf32>
    %40 = vector.shape_cast %39 : vector<4x8x32xf32> to vector<32x32xf32>
    %41 = arith.truncf %40 : vector<32x32xf32> to vector<32x32xbf16>
    %cst_15 = arith.constant dense<0.000000e+00> : vector<32x128xf32>
    %42 = tpu.matmul %41, %1, %cst_15 {dimension_numbers = #tpu.dot_dimension_numbers<[1], [0], [0], [1], [0, 0, 1, 1], [], []>} : vector<32x32xbf16>, vector<32x128xbf16>, vector<32x128xf32> -> vector<32x128xf32>
    %43 = vector.broadcast %5 : vector<1x128xf32> to vector<32x128xf32>
    %44 = arith.addf %42, %43 : vector<32x128xf32>
    %45 = vector.shape_cast %44 : vector<32x128xf32> to vector<4x8x128xf32>
    %c0_16 = arith.constant 0 : index
    %c0_17 = arith.constant 0 : index
    %c0_18 = arith.constant 0 : index
    %46 = vector.load %arg5[%c0_16, %c0_17, %c0_18] : memref<4x8x128xf32, #tpu.memory_space<vmem>>, vector<4x8x128xf32>
    tpu.vector_store %arg5[%c0_16, %c0_17, %c0_18], %45 {strides = array<i32>} : memref<4x8x128xf32, #tpu.memory_space<vmem>>, vector<4x8x128xf32>,
    return
  }
  func.func @transform_0(%arg0: i32) -> (i32, i32, i32) {
    %c0_i32 = arith.constant 0 : i32
    %c0_i32_0 = arith.constant 0 : i32
    %c0_i32_1 = arith.constant 0 : i32
    return %arg0, %c0_i32, %c0_i32_0 : i32, i32, i32
  }
  func.func @transform_1(%arg0: i32) -> (i32, i32) {
    %c0_i32 = arith.constant 0 : i32
    %c0_i32_0 = arith.constant 0 : i32
    %c0_i32_1 = arith.constant 0 : i32
    return %c0_i32, %c0_i32_0 : i32, i32
  }
  func.func @transform_2(%arg0: i32) -> (i32, i32) {
    %c0_i32 = arith.constant 0 : i32
    %c0_i32_0 = arith.constant 0 : i32
    %c0_i32_1 = arith.constant 0 : i32
    return %c0_i32, %c0_i32_0 : i32, i32
  }
  func.func @transform_3(%arg0: i32) -> (i32, i32) {
    %c0_i32 = arith.constant 0 : i32
    %c0_i32_0 = arith.constant 0 : i32
    %c0_i32_1 = arith.constant 0 : i32
    return %c0_i32, %c0_i32_0 : i32, i32
  }
  func.func @transform_4(%arg0: i32) -> (i32, i32, i32) {
    %c0_i32 = arith.constant 0 : i32
    %c0_i32_0 = arith.constant 0 : i32
    %c0_i32_1 = arith.constant 0 : i32
    return %arg0, %c0_i32, %c0_i32_0 : i32, i32, i32
  }
}

</mosaic_0001>

<llo_original>
// kernel: nnsolver_two_forward.1
$region0: #{nnsolver_two_forward.1}
  #allocation0 [shape = 'u32[]', space=smem, size = 0x4, offset = 0x4, fixed_abs, tag = 'smem constant byte address 0x4 - core index']
  #allocation1 [shape = 'u32[144,128]{1,0:T(1,128)}', space=vmem, size = 0x12000, scoped, tag = 'internal scratch']
  %s0 = inlined_call_operand.vmem [shape: f32[4,8,16], index: 0, kind: input, shape index: {}]
  %s1 = inlined_call_operand.vmem [shape: bf16[16,32], index: 1, kind: input, shape index: {}]
  %s2 = inlined_call_operand.vmem [shape: f32[8,128], index: 2, kind: input, shape index: {}]
  %s3 = inlined_call_operand.vmem [shape: bf16[32,128], index: 3, kind: input, shape index: {}]
  %s4 = inlined_call_operand.hbm [shape: f32[4,8,128], index: 4, kind: output, shape index: {}]
  %s5 = sld [smem:[#allocation0]]
  $region26: #{nnsolver_two_forward.1} parent=0
    _
  %s7 = ssub.s32 1, %s5
  %s8 = scalar_select 0, %s7, %s5
  $region1: #{nnsolver_two_forward.1} parent=0
    #allocation2 [shape = 'u8[16384]{0}', space=vmem, size = 0x4000, scoped, tag = 'output window, operand 0, single buffered']
    #allocation3 [shape = 's32[1]{0}', space=sflag, size = 0x4, scoped, tag = 'scoped memory for nnsolver_two_forward.1']
    %9 = vsyncpa [#allocation3], 0
    // Predicated region
    $region2: #{nnsolver_two_forward.1} parent=1 // pred_check
      _
    $region3: #{nnsolver_two_forward.1} parent=1 // pred_check_branch
      %11 = sbr.rel (0) target = $region5
    $region4: #{nnsolver_two_forward.1} parent=1 // pred_region
      _
    $region5: #{nnsolver_two_forward.1} parent=1 // pred_fallthru
      _
    // Predicated region
    $region6: #{nnsolver_two_forward.1} parent=1 // pred_check
      _
    $region7: #{nnsolver_two_forward.1} parent=1 // pred_check_branch
      %13 = sbr.rel (0) target = $region9
    $region8: #{nnsolver_two_forward.1} parent=1 // pred_region
      _
    $region9: #{nnsolver_two_forward.1} parent=1 // pred_fallthru
      _
    // Predicated region
    $region10: #{nnsolver_two_forward.1} parent=1 // pred_check
      _
    $region11: #{nnsolver_two_forward.1} parent=1 // pred_check_branch
      %15 = sbr.rel (0) target = $region13
    $region12: #{nnsolver_two_forward.1} parent=1 // pred_region
      _
    $region13: #{nnsolver_two_forward.1} parent=1 // pred_fallthru
      _
    // Predicated region
    $region14: #{nnsolver_two_forward.1} parent=1 // pred_check
      _
    $region15: #{nnsolver_two_forward.1} parent=1 // pred_check_branch
      %17 = sbr.rel (0) target = $region17
    $region16: #{nnsolver_two_forward.1} parent=1 // pred_region
      _
    $region17: #{nnsolver_two_forward.1} parent=1 // pred_fallthru
      _
    %v19 = vld [vmem:[%s1] sm:$0xf]
    %v20 = vld [vmem:[%s1 + $0x4] sm:$0xf]
    %v21 = vld [vmem:[%s3] sm:$0xf]
    %v22 = vld [vmem:[%s3 + $0x4] sm:$0xf]
    %v23 = vld [vmem:[%s3 + $0x8] sm:$0xf]
    %v24 = vld [vmem:[%s3 + $0xc] sm:$0xf]
    %v25 = vld [vmem:[%s2] sm:$0xff]
    %v26 = vld [vmem:[%s0] sm:$0xff]
    %v27 = vld [vmem:[%s0 + $0x8] sm:$0xff]
    %v28 = vld [vmem:[%s0 + $0x10] sm:$0xff]
    %v29 = vld [vmem:[%s0 + $0x18] sm:$0xff]
    %v30 = vpack.c.bf16 %v27, %v26
    %v31 = vpack.c.bf16 %v29, %v28
    %v34 = vunpack.c.l.b16 %v19
    %v35 = vunpack.c.l.b16 %v20
    %v36 = vpack.c.b16 %v35, %v34
    %vm38 = vcmask 130048
    %v40 = vsel %vm38, %v30, 0
    %v43 = vsel %vm38, %v31, 0
    %45 = vmatprep.subr.bf16.mxu0 0
    %46 = vmatpush1.bf16.msra.mxu0 0
    %47 = vmatprep.subr.bf16.mxu0 0
    %48 = vmatpush1.bf16.msra.mxu0 0
    %49 = vmatprep.subr.bf16.mxu0 0
    %50 = vmatpush1.bf16.msra.mxu0 0
    %51 = vmatprep.subr.bf16.mxu0 0
    %52 = vmatpush1.bf16.msra.mxu0 0
    %53 = vmatprep.subr.bf16.mxu0 0
    %54 = vmatpush1.bf16.msra.mxu0 0
    %55 = vmatprep.subr.bf16.mxu0 0
    %56 = vmatpush1.bf16.msra.mxu0 0
    %57 = vmatprep.subr.bf16.mxu0 0
    %58 = vmatpush1.bf16.msra.mxu0 0
    %59 = vmatprep.subr.bf16.mxu0 0
    %60 = vmatpush1.bf16.msra.mxu0 %v36
    %61 = vmatprep.subr.bf16.mxu0 0
    %62 = vmatpush2.bf16.msra.mxu0 0
    %63 = vmatprep.subr.bf16.mxu0 0
    %64 = vmatpush2.bf16.msra.mxu0 0
    %65 = vmatprep.subr.bf16.mxu0 0
    %66 = vmatpush2.bf16.msra.mxu0 0
    %67 = vmatprep.subr.bf16.mxu0 0
    %68 = vmatpush2.bf16.msra.mxu0 0
    %69 = vmatprep.subr.bf16.mxu0 0
    %70 = vmatpush2.bf16.msra.mxu0 0
    %71 = vmatprep.subr.bf16.mxu0 0
    %72 = vmatpush2.bf16.msra.mxu0 0
    %73 = vmatprep.subr.bf16.mxu0 0
    %74 = vmatpush2.bf16.msra.mxu0 0
    %75 = vmatprep.subr.bf16.mxu0 0
    %76 = vmatpush2.bf16.msra.mxu0 0
    %77 = vmatprep.mubr.bf16.mxu0 0
    %78 = vmatmul.mubr.bf16.gmra.mxu0 %v40
    %v79 = vpop.f32.mrf.mxu0
    %v80 = vadd.f32 0.0, %v79
    %v81 = vpop.f32.mrf.mxu0
    %v82 = vpop.f32.mrf.mxu0
    %v83 = vadd.f32 0.0, %v82
    %v84 = vpop.f32.mrf.mxu0
    %85 = vmatprep.mubr.bf16.mxu0 0
    %86 = vmatmul.mubr.bf16.gmra.mxu0 %v43
    %v87 = vpop.f32.mrf.mxu0
    %v88 = vadd.f32 0.0, %v87
    %v89 = vpop.f32.mrf.mxu0
    %v90 = vpop.f32.mrf.mxu0
    %v91 = vadd.f32 0.0, %v90
    %v92 = vpop.f32.mrf.mxu0
    %93 = vdwg.mxu0
    %vm94 = vcmask 261120
    %v95 = vsel %vm94, %v80, 0.0
    %v96 = vrot.slane %v95, 4
    %v97 = vadd.f32 %v95, %v96
    %v98 = vrot.slane %v97, 2
    %v99 = vadd.f32 %v97, %v98
    %v100 = vrot.slane %v99, 1
    %v101 = vadd.f32 %v99, %v100
    %v102 = vsel %vm94, %v83, 0.0
    %v103 = vrot.slane %v102, 4
    %v104 = vadd.f32 %v102, %v103
    %v105 = vrot.slane %v104, 2
    %v106 = vadd.f32 %v104, %v105
    %v107 = vrot.slane %v106, 1
    %v108 = vadd.f32 %v106, %v107
    %v109 = vsel %vm94, %v88, 0.0
    %v110 = vrot.slane %v109, 4
    %v111 = vadd.f32 %v109, %v110
    %v112 = vrot.slane %v111, 2
    %v113 = vadd.f32 %v111, %v112
    %v114 = vrot.slane %v113, 1
    %v115 = vadd.f32 %v113, %v114
    %v116 = vsel %vm94, %v91, 0.0
    %v117 = vrot.slane %v116, 4
    %v118 = vadd.f32 %v116, %v117
    %v119 = vrot.slane %v118, 2
    %v120 = vadd.f32 %v118, %v119
    %v121 = vrot.slane %v120, 1
    %v122 = vadd.f32 %v120, %v121
    %v123 = vmul.f32 %v80, %v80
    %v124 = vmul.f32 %v83, %v83
    %v125 = vmul.f32 %v88, %v88
    %v126 = vmul.f32 %v91, %v91
    %v127 = vsel %vm94, %v123, 0.0
    %v128 = vrot.slane %v127, 4
    %v129 = vadd.f32 %v127, %v128
    %v130 = vrot.slane %v129, 2
    %v131 = vadd.f32 %v129, %v130
    %v132 = vrot.slane %v131, 1
    %v133 = vadd.f32 %v131, %v132
    %v134 = vsel %vm94, %v124, 0.0
    %v135 = vrot.slane %v134, 4
    %v136 = vadd.f32 %v134, %v135
    %v137 = vrot.slane %v136, 2
    %v138 = vadd.f32 %v136, %v137
    %v139 = vrot.slane %v138, 1
    %v140 = vadd.f32 %v138, %v139
    %v141 = vsel %vm94, %v125, 0.0
    %v142 = vrot.slane %v141, 4
    %v143 = vadd.f32 %v141, %v142
    %v144 = vrot.slane %v143, 2
    %v145 = vadd.f32 %v143, %v144
    %v146 = vrot.slane %v145, 1
    %v147 = vadd.f32 %v145, %v146
    %v148 = vsel %vm94, %v126, 0.0
    %v149 = vrot.slane %v148, 4
    %v150 = vadd.f32 %v148, %v149
    %v151 = vrot.slane %v150, 2
    %v152 = vadd.f32 %v150, %v151
    %v153 = vrot.slane %v152, 1
    %v154 = vadd.f32 %v152, %v153
    %v155 = vmul.f32 %v101, 0.125
    %v156 = vmul.f32 %v108, 0.125
    %v157 = vmul.f32 %v115, 0.125
    %v158 = vmul.f32 %v122, 0.125
    %v159 = vmul.f32 %v133, 0.125
    %v160 = vmul.f32 %v140, 0.125
    %v161 = vmul.f32 %v147, 0.125
    %v162 = vmul.f32 %v154, 0.125
    %v163 = vmul.f32 %v155, %v155
    %v164 = vmul.f32 %v156, %v156
    %v165 = vmul.f32 %v157, %v157
    %v166 = vmul.f32 %v158, %v158
    %v167 = vsub.f32 %v159, %v163
    %v168 = vsub.f32 %v160, %v164
    %v169 = vsub.f32 %v161, %v165
    %v170 = vsub.f32 %v162, %v166
    %v171 = vmax.f32 %v167, 0.0
    %v172 = vmax.f32 %v168, 0.0
    %v173 = vmax.f32 %v169, 0.0
    %v174 = vmax.f32 %v170, 0.0
    %v175 = vadd.f32 %v171, 1e-05
    %v176 = vadd.f32 %v172, 1e-05
    %v177 = vadd.f32 %v173, 1e-05
    %v178 = vadd.f32 %v174, 1e-05
    %v179 = vrsqrt.pop %v175
    %v180 = vrsqrt.pop %v176
    %v181 = vrsqrt.pop %v177
    %v182 = vrsqrt.pop %v178
    %v183 = vmul.f32 %v25, %v179
    %v184 = vmul.f32 %v25, %v180
    %v185 = vmul.f32 %v25, %v181
    %v186 = vmul.f32 %v25, %v182
    %v187 = vmul.f32 %v155, %v183
    %v188 = vmul.f32 %v156, %v184
    %v189 = vmul.f32 %v157, %v185
    %v190 = vmul.f32 %v158, %v186
    %v195 = vrot.slane %v187, 7
    %v196 = vrot.slane %v188, 7
    %v197 = vrot.slane %v189, 7
    %v198 = vrot.slane %v190, 7
    %v203 = vsub.f32 %v25, %v195
    %v204 = vsub.f32 %v25, %v196
    %v205 = vsub.f32 %v25, %v197
    %v206 = vsub.f32 %v25, %v198
    %v207 = vlaneseq
    %v208 = vshrl.u32 %v207, 7
    %v209 = vsub.s32 0, %v208
    %v210 = vrot.slane %v183, %v209
    %v211 = vlaneseq
    %v212 = vshrl.u32 %v211, 7
    %v213 = vsub.s32 0, %v212
    %v214 = vrot.slane %v184, %v213
    %v215 = vlaneseq
    %v216 = vshrl.u32 %v215, 7
    %v217 = vsub.s32 0, %v216
    %v218 = vrot.slane %v185, %v217
    %v219 = vlaneseq
    %v220 = vshrl.u32 %v219, 7
    %v221 = vsub.s32 0, %v220
    %v222 = vrot.slane %v186, %v221
    %v223 = vmul.f32 %v80, %v210
    %v224 = vmul.f32 %v83, %v214
    %v225 = vmul.f32 %v88, %v218
    %v226 = vmul.f32 %v91, %v222
    %v227 = vlaneseq
    %v228 = vshrl.u32 %v227, 7
    %v229 = vsub.s32 1, %v228
    %v230 = vrot.slane %v203, %v229
    %v231 = vlaneseq
    %v232 = vshrl.u32 %v231, 7
    %v233 = vsub.s32 1, %v232
    %v234 = vrot.slane %v204, %v233
    %v235 = vlaneseq
    %v236 = vshrl.u32 %v235, 7
    %v237 = vsub.s32 1, %v236
    %v238 = vrot.slane %v205, %v237
    %v239 = vlaneseq
    %v240 = vshrl.u32 %v239, 7
    %v241 = vsub.s32 1, %v240
    %v242 = vrot.slane %v206, %v241
    %v243 = vadd.f32 %v223, %v230
    %v244 = vadd.f32 %v224, %v234
    %v245 = vadd.f32 %v225, %v238
    %v246 = vadd.f32 %v226, %v242
    %v247 = vmax.f32 %v243, 0.0
    %v248 = vmax.f32 %v244, 0.0
    %v249 = vmax.f32 %v245, 0.0
    %v250 = vmax.f32 %v246, 0.0
    %v251 = vpack.c.bf16 %v248, %v247
    %v252 = vpack.c.bf16 %v250, %v249
    %v253 = vlaneseq
    %v254 = vshrl.u32 %v253, 7
    %v255 = vsub.s32 2, %v254
    %v256 = vrot.slane %v25, %v255
    %v261 = vunpack.c.l.b16 %v21
    %v262 = vunpack.c.l.b16 %v22
    %v263 = vunpack.c.l.b16 %v23
    %v264 = vunpack.c.l.b16 %v24
    %v265 = vpack.c.b16 %v262, %v261
    %v266 = vpack.c.b16 %v264, %v263
    %v270 = vsel %vm94, %v251, 0
    %v273 = vsel %vm94, %v252, 0
    %275 = vmatprep.subr.bf16.mxu0 0
    %276 = vmatpush1.bf16.msra.mxu0 0
    %277 = vmatprep.subr.bf16.mxu0 0
    %278 = vmatpush1.bf16.msra.mxu0 0
    %279 = vmatprep.subr.bf16.mxu0 0
    %280 = vmatpush1.bf16.msra.mxu0 0
    %281 = vmatprep.subr.bf16.mxu0 0
    %282 = vmatpush1.bf16.msra.mxu0 0
    %283 = vmatprep.subr.bf16.mxu0 0
    %284 = vmatpush1.bf16.msra.mxu0 0
    %285 = vmatprep.subr.bf16.mxu0 0
    %286 = vmatpush1.bf16.msra.mxu0 0
    %287 = vmatprep.subr.bf16.mxu0 0
    %288 = vmatpush1.bf16.msra.mxu0 %v266
    %289 = vmatprep.subr.bf16.mxu0 0
    %290 = vmatpush1.bf16.msra.mxu0 %v265
    %291 = vmatprep.subr.bf16.mxu0 0
    %292 = vmatpush2.bf16.msra.mxu0 0
    %293 = vmatprep.subr.bf16.mxu0 0
    %294 = vmatpush2.bf16.msra.mxu0 0
    %295 = vmatprep.subr.bf16.mxu0 0
    %296 = vmatpush2.bf16.msra.mxu0 0
    %297 = vmatprep.subr.bf16.mxu0 0
    %298 = vmatpush2.bf16.msra.mxu0 0
    %299 = vmatprep.subr.bf16.mxu0 0
    %300 = vmatpush2.bf16.msra.mxu0 0
    %301 = vmatprep.subr.bf16.mxu0 0
    %302 = vmatpush2.bf16.msra.mxu0 0
    %303 = vmatprep.subr.bf16.mxu0 0
    %304 = vmatpush2.bf16.msra.mxu0 0
    %305 = vmatprep.subr.bf16.mxu0 0
    %306 = vmatpush2.bf16.msra.mxu0 0
    %307 = vmatprep.mubr.bf16.mxu0 0
    %308 = vmatmul.mubr.bf16.gmra.mxu0 %v270
    %v309 = vpop.f32.mrf.mxu0
    %v310 = vadd.f32 %v256, %v309
    %v311 = vpop.f32.mrf.mxu0
    %v312 = vpop.f32.mrf.mxu0
    %v313 = vadd.f32 %v256, %v312
    %v314 = vpop.f32.mrf.mxu0
    %315 = vmatprep.mubr.bf16.mxu0 0
    %316 = vmatmul.mubr.bf16.gmra.mxu0 %v273
    %v317 = vpop.f32.mrf.mxu0
    %v318 = vadd.f32 %v256, %v317
    %v319 = vpop.f32.mrf.mxu0
    %v320 = vpop.f32.mrf.mxu0
    %v321 = vadd.f32 %v256, %v320
    %v322 = vpop.f32.mrf.mxu0
    %323 = vdwg.mxu0
    %324 = vst [vmem:[#allocation2] sm:$0xff] %v310
    %325 = vst [vmem:[#allocation2 + $0x8] sm:$0xff] %v313
    %326 = vst [vmem:[#allocation2 + $0x10] sm:$0xff] %v318
    %327 = vst [vmem:[#allocation2 + $0x18] sm:$0xff] %v321
    // Predicated region
    $region18: #{nnsolver_two_forward.1} parent=1 // pred_check
      _
    $region19: #{nnsolver_two_forward.1} parent=1 // pred_check_branch
      %329 = sbr.rel (0) target = $region21
    $region20: #{nnsolver_two_forward.1} parent=1 // pred_region
      %s331 = ssub.s32 512, 512
      %332 = vsyncadd [#allocation3], %s331
      %s333 = sshll.u32 [#allocation2], 4
      %s334 = int_to_ptr.vmem [resolvable:$true] %s333
      %339 = dma.vmem_to_hbm [thread:$0]  %s334, 512, %s4, [#allocation3], 128, 128, 8
    $region21: #{nnsolver_two_forward.1} parent=1 // pred_fallthru
      _
    // Predicated region
    $region22: #{nnsolver_two_forward.1} parent=1 // pred_check
      _
    $region23: #{nnsolver_two_forward.1} parent=1 // pred_check_branch
      %341 = sbr.rel (0) target = $region25
    $region24: #{nnsolver_two_forward.1} parent=1 // pred_region
      %342 = dma.done [#allocation3], 512
    $region25: #{nnsolver_two_forward.1} parent=1 // pred_fallthru
      _
    %343 = vsyncpa [#allocation3], 1

</llo_original>
